<compile_context>
chip_gen: v6e
topology: v6e:2x2x1
jax: 0.10.0
libtpu: 0.0.40
codegen_flags: <defaults>
</compile_context>

<pallas_src>
import functools

import jax
import jax.numpy as jnp
import numpy as np
from jax import lax
from jax.experimental import pallas as pl
from jax.experimental.pallas import tpu as pltpu

_LANE = 128


def _losser_kernel(pred_ref, target_ref, out_ref,
                   l1_acc, tvh_acc, tvw_acc, tvb_acc, carry_ref, *,
                   c_pix, c_tvh, c_tvw, tb, n_b_blocks, b_total,
                   needs_mask, use_carry):
    p = pl.program_id(0)   # partial-sum axis ("parallel", shards across TCs)
    b = pl.program_id(1)   # plane-block axis ("arbitrary")
    h = pl.program_id(2)   # H-tile axis ("arbitrary", innermost)

    @pl.when((b == 0) & (h == 0))
    def _init():
        l1_acc[...] = jnp.zeros_like(l1_acc)
        tvh_acc[...] = jnp.zeros_like(tvh_acc)
        tvw_acc[...] = jnp.zeros_like(tvw_acc)
        tvb_acc[...] = jnp.zeros_like(tvb_acc)

    x = pred_ref[...].astype(jnp.float32)    # (TB, TH, W)
    t = target_ref[...].astype(jnp.float32)

    if needs_mask:
        # Tail / duplicated (clamped) blocks: zero planes whose *logical*
        # index is >= B.  Zero planes contribute 0 to both L1 and TV sums.
        blk = p * n_b_blocks + b
        plane_idx = blk * tb + lax.broadcasted_iota(jnp.int32, x.shape, 0)
        valid = plane_idx < b_total
        x = jnp.where(valid, x, 0.0)
        t = jnp.where(valid, t, 0.0)

    # Per-step reductions only over the leading plane axis (pure VPU adds into
    # wide f32 accumulators); the XLU scalar reduce is deferred to finalize.
    l1_acc[...] += jnp.sum(jnp.abs(x - t), axis=0)

    if c_tvh != 0.0:  # static guard (H > 1 and tv weight != 0)
        tvh_acc[...] += jnp.sum(jnp.abs(x[:, 1:, :] - x[:, :-1, :]), axis=0)
        if use_carry:  # static: only when there is more than one H tile
            carry_prev = carry_ref[...]                                # (TB,1,W)
            bsum = jnp.sum(jnp.abs(x[:, :1, :] - carry_prev), axis=0)  # (1,W)
            # h == 0 has no previous tile: contribution masked to zero
            # (also discards the uninitialised-carry garbage, select is NaN-safe).
            tvb_acc[...] += jnp.where(h > 0, bsum, 0.0)
            carry_ref[...] = x[:, -1:, :]

    if c_tvw != 0.0:  # static guard (W > 1 and tv weight != 0)
        tvw_acc[...] += jnp.sum(jnp.abs(x[:, :, 1:] - x[:, :, :-1]), axis=0)

    @pl.when((b == pl.num_programs(1) - 1) & (h == pl.num_programs(2) - 1))
    def _finalize():
        pixel_w = c_pix * jnp.sum(l1_acc[...], keepdims=True)          # (1,1)
        tv_w = jnp.zeros((1, 1), jnp.float32)
        if c_tvh != 0.0:
            s = jnp.sum(tvh_acc[...], keepdims=True)
            if use_carry:
                s = s + jnp.sum(tvb_acc[...], keepdims=True)
            tv_w = tv_w + c_tvh * s
        if c_tvw != 0.0:
            tv_w = tv_w + c_tvw * jnp.sum(tvw_acc[...], keepdims=True)
        total = pixel_w + tv_w
        # Pack the three scalars into one lane-dense (1, 8, 128) block:
        #   lane 0 = total, lane 1 = weighted pixel, lane 2 = weighted tv.
        lane = lax.broadcasted_iota(jnp.int32, out_ref.shape, 2)
        out_ref[...] = jnp.where(lane == 0, total,
                                 jnp.where(lane == 1, pixel_w, tv_w))


def _choose_tiling(B, H, W, dtype):
    """Generation-aware H-tile / plane-count / VMEM-limit selection."""
    itemsize = jnp.dtype(dtype).itemsize
    sub = {4: 8, 2: 16, 1: 32}.get(itemsize, 8)      # sublane multiple
    w_pad = -(-W // _LANE) * _LANE

    vmem_cap = None
    try:
        info = pltpu.get_tpu_info()
        vmem_cap = getattr(info, "vmem_capacity_bytes", None)
    except Exception:
        vmem_cap = None

    if vmem_cap is not None and int(vmem_cap) > 64 * 1024 * 1024:
        # v5e / v6e class (128 MiB physical VMEM per TensorCore).
        vmem_limit = 64 * 1024 * 1024
        block_budget = 6 * 1024 * 1024
    else:
        # v7x class (64 MiB physical VMEM) or unknown: stay conservative so
        # 2 inputs x 2 pipeline buffers + f32 accumulators always fit.
        vmem_limit = 48 * 1024 * 1024
        block_budget = 5 * 1024 * 1024

    row_bytes = w_pad * itemsize
    # Aim for >= ~8 planes per block (bounds accumulator read-modify-write
    # traffic): shrink the H tile rather than the plane count.
    th_target = max(sub, min(512, (block_budget // (8 * row_bytes)) // sub * sub))
    if H <= th_target:
        th = H
    else:
        th = None
        for cand in range(th_target, 0, -sub):
            if H % cand == 0:
                th = cand
                break
        if th is None:
            # TODO(synk): pad/mask the H axis instead of whole-plane fallback.
            th = H
    th_pad = -(-th // sub) * sub
    plane_bytes = th_pad * row_bytes
    tb_max = max(1, block_budget // plane_bytes)
    return th, tb_max, vmem_limit


def _losser_forward(pred, target, w_pixel, w_tv):
    N, C, H, W = pred.shape
    B = N * C
    pred3 = pred.reshape(B, H, W)        # free contiguous reshape
    target3 = target.reshape(B, H, W)

    # Two partial sums on a leading "parallel" axis so a 2-TensorCore chip
    # (v7x) shards the work; on 1-TC chips it is two cheap outer iterations.
    P = 2 if B >= 2 else 1

    th, tb_max, vmem_limit = _choose_tiling(B, H, W, pred3.dtype)
    per_partial = -(-B // P)
    tb = max(1, min(per_partial, tb_max))
    n_b = -(-B // (P * tb))
    n_h = H // th

    n_valid_blocks = -(-B // tb)
    needs_clamp = (P * n_b) > n_valid_blocks
    needs_mask = (P * n_b * tb) > B

    # Fold weights and element counts into compile-time constants.
    c_pix = w_pixel / float(B * H * W)
    c_tvh = (w_tv / float(B * (H - 1) * W)) if H > 1 else 0.0
    c_tvw = (w_tv / float(B * H * (W - 1))) if W > 1 else 0.0
    use_carry = (n_h > 1) and (c_tvh != 0.0)

    kernel = functools.partial(
        _losser_kernel,
        c_pix=c_pix, c_tvh=c_tvh, c_tvw=c_tvw,
        tb=tb, n_b_blocks=n_b, b_total=B,
        needs_mask=needs_mask, use_carry=use_carry)

    if needs_clamp:
        max_blk = n_valid_blocks - 1

        def b_block(p, b):
            # Keep every DMA in-bounds; duplicated (clamped) blocks are zeroed
            # in-kernel by the plane-index mask.
            return jnp.minimum(p * n_b + b, max_blk)
    else:
        def b_block(p, b):
            return p * n_b + b

    in_spec = pl.BlockSpec((tb, th, W), lambda p, b, h: (b_block(p, b), h, 0))
    out_spec = pl.BlockSpec((1, 8, 128), lambda p, b, h: (p, 0, 0))

    carry_shape = (tb, 1, W) if use_carry else (1, 8, 128)
    scratch_shapes = [
        pltpu.VMEM((th, W), jnp.float32),                # l1 accumulator
        pltpu.VMEM((max(th - 1, 1), W), jnp.float32),    # tv_h accumulator
        pltpu.VMEM((th, max(W - 1, 1)), jnp.float32),    # tv_w accumulator
        pltpu.VMEM((1, W), jnp.float32),                 # tv_h tile-boundary acc
        pltpu.VMEM(carry_shape, jnp.float32),            # last-row carry
    ]

    out = pl.pallas_call(
        kernel,
        out_shape=jax.ShapeDtypeStruct((P, 8, 128), jnp.float32),
        grid_spec=pltpu.PrefetchScalarGridSpec(
            num_scalar_prefetch=0,
            grid=(P, n_b, n_h),
            in_specs=[in_spec, in_spec],
            out_specs=out_spec,
            scratch_shapes=scratch_shapes),
        compiler_params=pltpu.CompilerParams(
            dimension_semantics=("parallel", "arbitrary", "arbitrary"),
            vmem_limit_bytes=vmem_limit),
    )(pred3, target3)

    total = jnp.sum(out[:, 0, 0])
    pixel_w = jnp.sum(out[:, 0, 1])
    tv_w = jnp.sum(out[:, 0, 2])
    return total, pixel_w, tv_w


class Losser:
    """JAX/Pallas equivalent of the PyTorch Losser module."""

    def __init__(self, option_loss=None):
        if option_loss is None:
            option_loss = {
                "pixel": {"weight": 1.0, "criterion": "l1"},
                "tv": {"weight": 0.1, "criterion": "l1"},
            }
        self.option_loss = option_loss
        self.last_losses = {}
        self._w_pixel = float(option_loss["pixel"]["weight"])
        self._w_tv = float(option_loss["tv"]["weight"])
        w_pixel, w_tv = self._w_pixel, self._w_tv

        def _fwd(pred, target):
            return _losser_forward(pred, target, w_pixel, w_tv)

        # jit the whole forward (reshape + pallas_call + partial-row sums) so
        # per-call Python / eager-dispatch overhead is removed.
        self._forward = jax.jit(_fwd)

    def __call__(self, pred, target):
        total, pixel_w, tv_w = self._forward(pred, target)
        # Lazy bookkeeping (no host sync here): device scalars, converted to
        # Python floats in get_last_losses().  Values are the *weighted*
        # per-loss terms, matching the PyTorch module (loss *= weight).
        self.last_losses = {"pixel": pixel_w, "tv": tv_w}
        return total

    def get_last_losses(self):
        return {k: float(v) for k, v in self.last_losses.items()}


def _reference_total_loss(pred, target, w_pixel=1.0, w_tv=0.1):
    """Pure-JAX reference for correctness checking."""
    pixel = jnp.mean(jnp.abs(pred - target))
    tv_h = jnp.mean(jnp.abs(pred[:, :, 1:, :] - pred[:, :, :-1, :]))
    tv_w = jnp.mean(jnp.abs(pred[:, :, :, 1:] - pred[:, :, :, :-1]))
    return w_pixel * pixel + w_tv * (tv_h + tv_w)


if __name__ == "__main__":
    key = jax.random.PRNGKey(0)
    losser = Losser()

    # Case 1: even plane count (exercises the 2-partial "parallel" axis).
    k1, k2 = jax.random.split(key)
    pred = jax.random.normal(k1, (2, 4, 16, 16), dtype=jnp.float32)
    target = jax.random.normal(k2, (2, 4, 16, 16), dtype=jnp.float32)
    total = jax.block_until_ready(losser(pred, target))
    ref = jax.block_until_ready(_reference_total_loss(pred, target))
    assert np.allclose(np.asarray(total), np.asarray(ref), rtol=1e-5, atol=1e-5), (
        f"pallas={total}, ref={ref}")
    _ = losser.get_last_losses()

    # Case 2: odd plane count (exercises the in-kernel tail-plane masking).
    k3, k4 = jax.random.split(k1)
    pred2 = jax.random.normal(k3, (1, 7, 16, 16), dtype=jnp.float32)
    target2 = jax.random.normal(k4, (1, 7, 16, 16), dtype=jnp.float32)
    total2 = jax.block_until_ready(losser(pred2, target2))
    ref2 = jax.block_until_ready(_reference_total_loss(pred2, target2))
    assert np.allclose(np.asarray(total2), np.asarray(ref2), rtol=1e-5, atol=1e-5), (
        f"pallas={total2}, ref={ref2}")

    print("KERNEL_OK")
</pallas_src>

<mosaic_0001>
module attributes {stable_mosaic.version = 11 : i64} {
  func.func @_losser_kernel(%arg0: i32, %arg1: i32, %arg2: i32, %arg3: memref<4x16x16xf32, #tpu.memory_space<vmem>>, %arg4: memref<4x16x16xf32, #tpu.memory_space<vmem>>, %arg5: memref<1x8x128xf32, #tpu.memory_space<vmem>>, %arg6: memref<16x16xf32, #tpu.memory_space<vmem>>, %arg7: memref<15x16xf32, #tpu.memory_space<vmem>>, %arg8: memref<16x15xf32, #tpu.memory_space<vmem>>, %arg9: memref<1x16xf32, #tpu.memory_space<vmem>>, %arg10: memref<1x8x128xf32, #tpu.memory_space<vmem>>) attributes {dimension_semantics = [#tpu.dimension_semantics<parallel>, #tpu.dimension_semantics<arbitrary>, #tpu.dimension_semantics<arbitrary>], iteration_bounds = array<i64: 2, 1, 1>, scalar_prefetch = 0 : i64, scratch_operands = 5 : i64, tpu.core_type = #tpu.core_type<tc>, window_params = [{transform_indices = @transform_0, window_bounds = array<i64: 4, 16, 16>}, {transform_indices = @transform_1, window_bounds = array<i64: 4, 16, 16>}, {transform_indices = @transform_2, window_bounds = array<i64: 1, 8, 128>}]} {
    %c0_i32 = arith.constant 0 : i32
    %0 = arith.cmpi eq, %arg1, %c0_i32 : i32
    %c0_i32_0 = arith.constant 0 : i32
    %1 = arith.cmpi eq, %arg2, %c0_i32_0 : i32
    %2 = arith.andi %0, %1 : i1
    %3 = arith.extui %2 : i1 to i32
    %c0_i32_1 = arith.constant 0 : i32
    %4 = arith.cmpi ne, %3, %c0_i32_1 : i32
    scf.if %4 {
      %cst_24 = arith.constant 0.000000e+00 : f32
      %34 = vector.broadcast %cst_24 : f32 to vector<16x16xf32>
      %c0_25 = arith.constant 0 : index
      %c0_26 = arith.constant 0 : index
      %35 = vector.load %arg6[%c0_25, %c0_26] : memref<16x16xf32, #tpu.memory_space<vmem>>, vector<16x16xf32>
      tpu.vector_store %arg6[%c0_25, %c0_26], %34 {strides = array<i32>} : memref<16x16xf32, #tpu.memory_space<vmem>>, vector<16x16xf32>,
      %cst_27 = arith.constant 0.000000e+00 : f32
      %36 = vector.broadcast %cst_27 : f32 to vector<15x16xf32>
      %c0_28 = arith.constant 0 : index
      %c0_29 = arith.constant 0 : index
      %37 = vector.load %arg7[%c0_28, %c0_29] : memref<15x16xf32, #tpu.memory_space<vmem>>, vector<15x16xf32>
      tpu.vector_store %arg7[%c0_28, %c0_29], %36 {strides = array<i32>} : memref<15x16xf32, #tpu.memory_space<vmem>>, vector<15x16xf32>,
      %cst_30 = arith.constant 0.000000e+00 : f32
      %38 = vector.broadcast %cst_30 : f32 to vector<16x15xf32>
      %c0_31 = arith.constant 0 : index
      %c0_32 = arith.constant 0 : index
      %39 = vector.load %arg8[%c0_31, %c0_32] : memref<16x15xf32, #tpu.memory_space<vmem>>, vector<16x15xf32>
      tpu.vector_store %arg8[%c0_31, %c0_32], %38 {strides = array<i32>} : memref<16x15xf32, #tpu.memory_space<vmem>>, vector<16x15xf32>,
      %cst_33 = arith.constant 0.000000e+00 : f32
      %40 = vector.broadcast %cst_33 : f32 to vector<1x16xf32>
      %c0_34 = arith.constant 0 : index
      %c0_35 = arith.constant 0 : index
      %41 = vector.load %arg9[%c0_34, %c0_35] : memref<1x16xf32, #tpu.memory_space<vmem>>, vector<1x16xf32>
      tpu.vector_store %arg9[%c0_34, %c0_35], %40 {strides = array<i32>} : memref<1x16xf32, #tpu.memory_space<vmem>>, vector<1x16xf32>,
    } else {
    }
    %c0 = arith.constant 0 : index
    %c0_2 = arith.constant 0 : index
    %c0_3 = arith.constant 0 : index
    %5 = vector.load %arg3[%c0, %c0_2, %c0_3] : memref<4x16x16xf32, #tpu.memory_space<vmem>>, vector<4x16x16xf32>
    %c0_4 = arith.constant 0 : index
    %c0_5 = arith.constant 0 : index
    %c0_6 = arith.constant 0 : index
    %6 = vector.load %arg4[%c0_4, %c0_5, %c0_6] : memref<4x16x16xf32, #tpu.memory_space<vmem>>, vector<4x16x16xf32>
    %c0_7 = arith.constant 0 : index
    %c0_8 = arith.constant 0 : index
    %7 = vector.load %arg6[%c0_7, %c0_8] : memref<16x16xf32, #tpu.memory_space<vmem>>, vector<16x16xf32>
    %8 = arith.subf %5, %6 : vector<4x16x16xf32>
    %9 = math.absf %8 : vector<4x16x16xf32>
    %cst = arith.constant dense<0.000000e+00> : vector<16x16xf32>
    %10 = vector.multi_reduction <add>, %9, %cst [0] : vector<4x16x16xf32> to vector<16x16xf32>
    %11 = arith.addf %7, %10 : vector<16x16xf32>
    %c0_9 = arith.constant 0 : index
    %c0_10 = arith.constant 0 : index
    %12 = vector.load %arg6[%c0_9, %c0_10] : memref<16x16xf32, #tpu.memory_space<vmem>>, vector<16x16xf32>
    tpu.vector_store %arg6[%c0_9, %c0_10], %11 {strides = array<i32>} : memref<16x16xf32, #tpu.memory_space<vmem>>, vector<16x16xf32>,
    %c0_11 = arith.constant 0 : index
    %c0_12 = arith.constant 0 : index
    %13 = vector.load %arg7[%c0_11, %c0_12] : memref<15x16xf32, #tpu.memory_space<vmem>>, vector<15x16xf32>
    %14 = vector.extract_strided_slice %5 {offsets = [0, 1, 0], sizes = [4, 15, 16], strides = [1, 1, 1]} : vector<4x16x16xf32> to vector<4x15x16xf32>
    %15 = vector.extract_strided_slice %5 {offsets = [0, 0, 0], sizes = [4, 15, 16], strides = [1, 1, 1]} : vector<4x16x16xf32> to vector<4x15x16xf32>
    %16 = arith.subf %14, %15 : vector<4x15x16xf32>
    %17 = math.absf %16 : vector<4x15x16xf32>
    %cst_13 = arith.constant dense<0.000000e+00> : vector<15x16xf32>
    %18 = vector.multi_reduction <add>, %17, %cst_13 [0] : vector<4x15x16xf32> to vector<15x16xf32>
    %19 = arith.addf %13, %18 : vector<15x16xf32>
    %c0_14 = arith.constant 0 : index
    %c0_15 = arith.constant 0 : index
    %20 = vector.load %arg7[%c0_14, %c0_15] : memref<15x16xf32, #tpu.memory_space<vmem>>, vector<15x16xf32>
    tpu.vector_store %arg7[%c0_14, %c0_15], %19 {strides = array<i32>} : memref<15x16xf32, #tpu.memory_space<vmem>>, vector<15x16xf32>,
    %c0_16 = arith.constant 0 : index
    %c0_17 = arith.constant 0 : index
    %21 = vector.load %arg8[%c0_16, %c0_17] : memref<16x15xf32, #tpu.memory_space<vmem>>, vector<16x15xf32>
    %22 = vector.extract_strided_slice %5 {offsets = [0, 0, 1], sizes = [4, 16, 15], strides = [1, 1, 1]} : vector<4x16x16xf32> to vector<4x16x15xf32>
    %23 = vector.extract_strided_slice %5 {offsets = [0, 0, 0], sizes = [4, 16, 15], strides = [1, 1, 1]} : vector<4x16x16xf32> to vector<4x16x15xf32>
    %24 = arith.subf %22, %23 : vector<4x16x15xf32>
    %25 = math.absf %24 : vector<4x16x15xf32>
    %cst_18 = arith.constant dense<0.000000e+00> : vector<16x15xf32>
    %26 = vector.multi_reduction <add>, %25, %cst_18 [0] : vector<4x16x15xf32> to vector<16x15xf32>
    %27 = arith.addf %21, %26 : vector<16x15xf32>
    %c0_19 = arith.constant 0 : index
    %c0_20 = arith.constant 0 : index
    %28 = vector.load %arg8[%c0_19, %c0_20] : memref<16x15xf32, #tpu.memory_space<vmem>>, vector<16x15xf32>
    tpu.vector_store %arg8[%c0_19, %c0_20], %27 {strides = array<i32>} : memref<16x15xf32, #tpu.memory_space<vmem>>, vector<16x15xf32>,
    %c0_i32_21 = arith.constant 0 : i32
    %29 = arith.cmpi eq, %arg1, %c0_i32_21 : i32
    %c0_i32_22 = arith.constant 0 : i32
    %30 = arith.cmpi eq, %arg2, %c0_i32_22 : i32
    %31 = arith.andi %29, %30 : i1
    %32 = arith.extui %31 : i1 to i32
    %c0_i32_23 = arith.constant 0 : i32
    %33 = arith.cmpi ne, %32, %c0_i32_23 : i32
    scf.if %33 {
      %c0_24 = arith.constant 0 : index
      %c0_25 = arith.constant 0 : index
      %34 = vector.load %arg6[%c0_24, %c0_25] : memref<16x16xf32, #tpu.memory_space<vmem>>, vector<16x16xf32>
      %35 = vector.shape_cast %34 : vector<16x16xf32> to vector<1x16x16xf32>
      %cst_26 = arith.constant dense<0.000000e+00> : vector<1xf32>
      %36 = vector.multi_reduction <add>, %35, %cst_26 [1, 2] : vector<1x16x16xf32> to vector<1xf32>
      %37 = vector.shape_cast %36 : vector<1xf32> to vector<1x1x1xf32>
      %38 = vector.extract %37[0, 0, 0] : f32 from vector<1x1x1xf32>
      %39 = vector.broadcast %38 : f32 to vector<1x1xf32>
      %cst_27 = arith.constant 4.8828125E-4 : f32
      %40 = vector.broadcast %cst_27 : f32 to vector<1x1xf32>
      %41 = arith.mulf %40, %39 : vector<1x1xf32>
      %cst_28 = arith.constant 0.000000e+00 : f32
      %42 = vector.broadcast %cst_28 : f32 to vector<1x1xf32>
      %c0_29 = arith.constant 0 : index
      %c0_30 = arith.constant 0 : index
      %43 = vector.load %arg7[%c0_29, %c0_30] : memref<15x16xf32, #tpu.memory_space<vmem>>, vector<15x16xf32>
      %44 = vector.shape_cast %43 : vector<15x16xf32> to vector<1x15x16xf32>
      %cst_31 = arith.constant dense<0.000000e+00> : vector<1xf32>
      %45 = vector.multi_reduction <add>, %44, %cst_31 [1, 2] : vector<1x15x16xf32> to vector<1xf32>
      %46 = vector.shape_cast %45 : vector<1xf32> to vector<1x1x1xf32>
      %47 = vector.extract %46[0, 0, 0] : f32 from vector<1x1x1xf32>
      %48 = vector.broadcast %47 : f32 to vector<1x1xf32>
      %cst_32 = arith.constant 5.20833346E-5 : f32
      %49 = vector.broadcast %cst_32 : f32 to vector<1x1xf32>
      %50 = arith.mulf %49, %48 : vector<1x1xf32>
      %51 = arith.addf %42, %50 : vector<1x1xf32>
      %c0_33 = arith.constant 0 : index
      %c0_34 = arith.constant 0 : index
      %52 = vector.load %arg8[%c0_33, %c0_34] : memref<16x15xf32, #tpu.memory_space<vmem>>, vector<16x15xf32>
      %53 = vector.shape_cast %52 : vector<16x15xf32> to vector<1x16x15xf32>
      %cst_35 = arith.constant dense<0.000000e+00> : vector<1xf32>
      %54 = vector.multi_reduction <add>, %53, %cst_35 [1, 2] : vector<1x16x15xf32> to vector<1xf32>
      %55 = vector.shape_cast %54 : vector<1xf32> to vector<1x1x1xf32>
      %56 = vector.extract %55[0, 0, 0] : f32 from vector<1x1x1xf32>
      %57 = vector.broadcast %56 : f32 to vector<1x1xf32>
      %cst_36 = arith.constant 5.20833346E-5 : f32
      %58 = vector.broadcast %cst_36 : f32 to vector<1x1xf32>
      %59 = arith.mulf %58, %57 : vector<1x1xf32>
      %60 = arith.addf %51, %59 : vector<1x1xf32>
      %61 = arith.addf %41, %60 : vector<1x1xf32>
      %62 = tpu.iota {dimensions = array<i32: 2>} : vector<1x8x128xi32>
      %c0_i32_37 = arith.constant 0 : i32
      %63 = vector.broadcast %c0_i32_37 : i32 to vector<1x8x128xi32>
      %64 = arith.cmpi eq, %62, %63 : vector<1x8x128xi32>
      %c1_i32 = arith.constant 1 : i32
      %65 = vector.broadcast %c1_i32 : i32 to vector<1x8x128xi32>
      %66 = arith.cmpi eq, %62, %65 : vector<1x8x128xi32>
      %67 = vector.shape_cast %41 : vector<1x1xf32> to vector<1x1x1xf32>
      %68 = vector.broadcast %67 : vector<1x1x1xf32> to vector<1x8x128xf32>
      %69 = vector.shape_cast %60 : vector<1x1xf32> to vector<1x1x1xf32>
      %70 = vector.broadcast %69 : vector<1x1x1xf32> to vector<1x8x128xf32>
      %71 = arith.select %66, %68, %70 : vector<1x8x128xi1>, vector<1x8x128xf32>
      %72 = vector.shape_cast %61 : vector<1x1xf32> to vector<1x1x1xf32>
      %73 = vector.broadcast %72 : vector<1x1x1xf32> to vector<1x8x128xf32>
      %74 = arith.select %64, %73, %71 : vector<1x8x128xi1>, vector<1x8x128xf32>
      %c0_38 = arith.constant 0 : index
      %c0_39 = arith.constant 0 : index
      %c0_40 = arith.constant 0 : index
      %75 = vector.load %arg5[%c0_38, %c0_39, %c0_40] : memref<1x8x128xf32, #tpu.memory_space<vmem>>, vector<1x8x128xf32>
      tpu.vector_store %arg5[%c0_38, %c0_39, %c0_40], %74 {strides = array<i32>} : memref<1x8x128xf32, #tpu.memory_space<vmem>>, vector<1x8x128xf32>,
    } else {
    }
    return
  }
  func.func @transform_0(%arg0: i32, %arg1: i32, %arg2: i32) -> (i32, i32, i32) {
    %c1_i32 = arith.constant 1 : i32
    %0 = arith.muli %arg0, %c1_i32 : i32
    %1 = arith.addi %0, %arg1 : i32
    %c0_i32 = arith.constant 0 : i32
    %c0_i32_0 = arith.constant 0 : i32
    return %1, %arg2, %c0_i32 : i32, i32, i32
  }
  func.func @transform_1(%arg0: i32, %arg1: i32, %arg2: i32) -> (i32, i32, i32) {
    %c1_i32 = arith.constant 1 : i32
    %0 = arith.muli %arg0, %c1_i32 : i32
    %1 = arith.addi %0, %arg1 : i32
    %c0_i32 = arith.constant 0 : i32
    %c0_i32_0 = arith.constant 0 : i32
    return %1, %arg2, %c0_i32 : i32, i32, i32
  }
  func.func @transform_2(%arg0: i32, %arg1: i32, %arg2: i32) -> (i32, i32, i32) {
    %c0_i32 = arith.constant 0 : i32
    %c0_i32_0 = arith.constant 0 : i32
    %c0_i32_1 = arith.constant 0 : i32
    return %arg0, %c0_i32, %c0_i32_0 : i32, i32, i32
  }
}

</mosaic_0001>

<llo_original>
// kernel: _fwd.1
$region0: #{_fwd.1}
  #allocation0 [shape = 'u32[]', space=smem, size = 0x4, offset = 0x4, fixed_abs, tag = 'smem constant byte address 0x4 - core index']
  #allocation1 [shape = 'u32[144,128]{1,0:T(1,128)}', space=vmem, size = 0x12000, scoped, tag = 'internal scratch']
  #allocation2 [shape = 'f32[16,16]{1,0:T(8,128)}', space=vmem, size = 0x2000, scoped, tag = 'scratch operand']
  #allocation3 [shape = 'f32[15,16]{1,0:T(8,128)}', space=vmem, size = 0x2000, scoped, tag = 'scratch operand']
  #allocation4 [shape = 'f32[16,15]{1,0:T(8,128)}', space=vmem, size = 0x2000, scoped, tag = 'scratch operand']
  #allocation5 [shape = 'f32[1,16]{1,0:T(1,128)}', space=vmem, size = 0x200, scoped, tag = 'scratch operand']
  #allocation6 [shape = 'f32[1,8,128]{2,1,0:T(8,128)}', space=vmem, size = 0x1000, scoped, tag = 'scratch operand']
  %s0 = inlined_call_operand.hbm [shape: f32[8,16,16], index: 0, kind: input, shape index: {}]
  %s1 = inlined_call_operand.hbm [shape: f32[8,16,16], index: 1, kind: input, shape index: {}]
  %s2 = inlined_call_operand.vmem [shape: f32[2,8,128], index: 2, kind: output, shape index: {}]
  %s3 = sld [smem:[#allocation0]]
  $region57: #{_fwd.1} parent=0
    _
  %s5 = ssub.s32 1, %s3
  %s6 = scalar_select 0, %s5, %s3
  $region1: #{_fwd.1} parent=0
    #allocation7 [shape = 'u8[65536]{0}', space=vmem, size = 0x10000, scoped, tag = 'input window, operand 0']
    #allocation8 [shape = 's32[2]{0}', space=sflag, size = 0x8, scoped, tag = 'scoped memory for _fwd.1']
    #allocation9 [shape = 'u8[65536]{0}', space=vmem, size = 0x10000, scoped, tag = 'input window, operand 1']
    #allocation10 [shape = 's32[2]{0}', space=sflag, size = 0x8, scoped, tag = 'scoped memory for _fwd.1']
    %7 = vsyncpa [#allocation8], 0
    %s8 = scalar_lea.sflag [#allocation8], 1
    %9 = vsyncpa %s8, 0
    %10 = vsyncpa [#allocation10], 0
    %s11 = scalar_lea.sflag [#allocation10], 1
    %12 = vsyncpa %s11, 0
    loop: start=0, step=1, limit=4
    $region2: #{_fwd.1} parent=1 // loop_pre_header
      _
    $region3: #{_fwd.1} parent=1 // loop_header
      %s14 = sphi 0, %s18
      %p15 = scmp.ge.s32.totalorder %s14, 4
      %s21 = sphi 0, %s40
      %s22 = sphi 0, %s36
      %s23 = sphi 0, %s32
      %s24 = sphi 0, %s21
      %s25 = sphi 0, %s22
      %s26 = sphi 0, %s23
      %s27 = sphi 0, %s24
      %s28 = sphi 0, %s25
      %s29 = sphi 0, %s26
      %s47 = sphi 0, %s49
      %s50 = sphi 0, %s47
      %s51 = sphi 0, %s50
      %s67 = sphi 0, %s51
      %s77 = sphi 0, %s79
      %s80 = sphi 0, %s77
      %s81 = sphi 0, %s80
      %s97 = sphi 0, %s81
      %s103 = sphi 0, %s105
      %s106 = sphi 0, %s103
      %s107 = sphi 0, %s106
      %s123 = sphi 0, %s107
    $region4: #{_fwd.1} parent=1 // loop_header_branch
      %17 = sbr.rel (%p15) target = $region8
    $region5: #{_fwd.1} parent=1 // loop_body
      %s19 = ssub.s32 %s14, 1
      %s20 = ssub.s32 %s14, 2
      %s30 = sadd.s32 1, %s23
      %p31 = scmp.ge.s32.totalorder %s30, 1
      %s32 = scalar_select %p31, 0, %s30
      %s33 = sadd.s32 1, %s22
      %s34 = scalar_select %p31, %s33, %s22
      %p35 = scmp.ge.s32.totalorder %s34, 1
      %s36 = scalar_select %p35, 0, %s34
      %s37 = sadd.s32 1, %s21
      %s38 = scalar_select %p35, %s37, %s21
      %p39 = scmp.ge.s32.totalorder %s38, 2
      %s40 = scalar_select %p39, 0, %s38
      %s41 = sadd.s32 %s21, %s22
      %s42 = sadd.s32 %s40, %s36
      %s43 = ssub.s32 %s41, %s42
      %s44 = ssub.s32 %s23, %s32
      %s45 = sor.u32 %s43, %s44
      %p46 = scmp.eq.s32.totalorder %s45, 0
      %s48 = sadd.s32 %s47, 1
      %s49 = scalar_select %p46, %s47, %s48
      %p52 = pneg %p46
      %p53 = scmp.eq.s32.totalorder %s14, 1
      %p54 = por %p52, %p53
      %p55 = scmp.ne.s32.totalorder %s47, %s50
      %p56 = scmp.eq.s32.totalorder %s14, 0
      %p57 = por %p55, %p56
      %p58 = scmp.ne.s32.totalorder %s47, %s50
      %p59 = scmp.eq.s32.totalorder %s19, 1
      %p60 = por %p58, %p59
      %p61 = scmp.ne.s32.totalorder %s50, %s51
      %p62 = scmp.eq.s32.totalorder %s19, 0
      %p63 = por %p61, %p62
      %p64 = scmp.ne.s32.totalorder %s50, %s51
      %p65 = scmp.eq.s32.totalorder %s20, 1
      %p66 = por %p64, %p65
      %p68 = scmp.ne.s32.totalorder %s51, %s67
      %p69 = scmp.eq.s32.totalorder %s20, 0
      %p70 = por %p68, %p69
      %s71 = sadd.s32 %s21, %s22
      %s72 = sadd.s32 %s40, %s36
      %s73 = ssub.s32 %s71, %s72
      %s74 = ssub.s32 %s23, %s32
      %s75 = sor.u32 %s73, %s74
      %p76 = scmp.eq.s32.totalorder %s75, 0
      %s78 = sadd.s32 %s77, 1
      %s79 = scalar_select %p76, %s77, %s78
      %p82 = pneg %p76
      %p83 = scmp.eq.s32.totalorder %s14, 1
      %p84 = por %p82, %p83
      %p85 = scmp.ne.s32.totalorder %s77, %s80
      %p86 = scmp.eq.s32.totalorder %s14, 0
      %p87 = por %p85, %p86
      %p88 = scmp.ne.s32.totalorder %s77, %s80
      %p89 = scmp.eq.s32.totalorder %s19, 1
      %p90 = por %p88, %p89
      %p91 = scmp.ne.s32.totalorder %s80, %s81
      %p92 = scmp.eq.s32.totalorder %s19, 0
      %p93 = por %p91, %p92
      %p94 = scmp.ne.s32.totalorder %s80, %s81
      %p95 = scmp.eq.s32.totalorder %s20, 1
      %p96 = por %p94, %p95
      %p98 = scmp.ne.s32.totalorder %s81, %s97
      %p99 = scmp.eq.s32.totalorder %s20, 0
      %p100 = por %p98, %p99
      %s101 = ssub.s32 %s21, %s40
      %p102 = scmp.eq.s32.totalorder %s101, 0
      %s104 = sadd.s32 %s103, 1
      %s105 = scalar_select %p102, %s103, %s104
      %p108 = pneg %p102
      %p109 = scmp.eq.s32.totalorder %s14, 1
      %p110 = por %p108, %p109
      %p111 = scmp.ne.s32.totalorder %s103, %s106
      %p112 = scmp.eq.s32.totalorder %s14, 0
      %p113 = por %p111, %p112
      %p114 = scmp.ne.s32.totalorder %s103, %s106
      %p115 = scmp.eq.s32.totalorder %s19, 1
      %p116 = por %p114, %p115
      %p117 = scmp.ne.s32.totalorder %s106, %s107
      %p118 = scmp.eq.s32.totalorder %s19, 0
      %p119 = por %p117, %p118
      %p120 = scmp.ne.s32.totalorder %s106, %s107
      %p121 = scmp.eq.s32.totalorder %s20, 1
      %p122 = por %p120, %p121
      %p124 = scmp.ne.s32.totalorder %s107, %s123
      %p125 = scmp.eq.s32.totalorder %s20, 0
      %p126 = por %p124, %p125
      %p127 = scmp.le.s32.totalorder 1, %s14
      %p128 = scmp.lt.s32.totalorder %s14, 3
      %p129 = pnand %p127, %p128
      %p130 = pneg %p129
      // Predicated region
      $region9: #{_fwd.1} parent=5 // pred_check
        _
      $region10: #{_fwd.1} parent=5 // pred_check_branch
        %132 = sbr.rel (%p129) target = $region12
      $region11: #{_fwd.1} parent=5 // pred_region
        %s133 = ssub.s32 %s14, 1
      $region12: #{_fwd.1} parent=5 // pred_fallthru
        _
      %p134 = scmp.lt.s32.totalorder %s14, 2
      // Predicated region
      $region13: #{_fwd.1} parent=5 // pred_check
        %p135 = pneg %p134
      $region14: #{_fwd.1} parent=5 // pred_check_branch
        %137 = sbr.rel (%p135) target = $region16
      $region15: #{_fwd.1} parent=5 // pred_region
        // Predicated region
        $region17: #{_fwd.1} parent=15 // pred_check
          %p138 = pneg %p57
        $region18: #{_fwd.1} parent=15 // pred_check_branch
          %140 = sbr.rel (%p138) target = $region20
        $region19: #{_fwd.1} parent=15 // pred_region
          %s141 = sand.u32 %s47, 1
          %s142 = scalar_lea.sflag [#allocation8], %s141
          %s143 = sand.u32 %s47, 1
          %s144 = smul.addr %s143, 64
          %s145 = scalar_lea.vmem [#allocation7], %s144
          %s146 = sadd.s32 %s21, %s22
          %s147 = smul.u32 4, %s146
          %s148 = smul.u32 2, %s23
          %s150 = ssub.s32 1024, 1024
          %151 = vsyncadd %s142, %s150
          %s152 = smul.addr %s147, 2
          %s153 = sadd.s32 %s148, %s152
          %s154 = smul.addr %s153, 128
          %s155 = scalar_lea.hbm %s0, %s154
          %s156 = sshll.u32 %s145, 4
          %s157 = int_to_ptr.vmem [resolvable:$true] %s156
          %162 = dma.hbm_to_vmem [thread:$0]  %s155, 1024, %s157, %s142, 128, 128, 8
        $region20: #{_fwd.1} parent=15 // pred_fallthru
          _
        // Predicated region
        $region21: #{_fwd.1} parent=15 // pred_check
          %p163 = pneg %p87
        $region22: #{_fwd.1} parent=15 // pred_check_branch
          %165 = sbr.rel (%p163) target = $region24
        $region23: #{_fwd.1} parent=15 // pred_region
          %s166 = sand.u32 %s77, 1
          %s167 = scalar_lea.sflag [#allocation10], %s166
          %s168 = sand.u32 %s77, 1
          %s169 = smul.addr %s168, 64
          %s170 = scalar_lea.vmem [#allocation9], %s169
          %s171 = sadd.s32 %s21, %s22
          %s172 = smul.u32 4, %s171
          %s173 = smul.u32 2, %s23
          %s175 = ssub.s32 1024, 1024
          %176 = vsyncadd %s167, %s175
          %s177 = smul.addr %s172, 2
          %s178 = sadd.s32 %s173, %s177
          %s179 = smul.addr %s178, 128
          %s180 = scalar_lea.hbm %s1, %s179
          %s181 = sshll.u32 %s170, 4
          %s182 = int_to_ptr.vmem [resolvable:$true] %s181
          %187 = dma.hbm_to_vmem [thread:$0]  %s180, 1024, %s182, %s167, 128, 128, 8
        $region24: #{_fwd.1} parent=15 // pred_fallthru
          _
      $region16: #{_fwd.1} parent=5 // pred_fallthru
        _
      %p188 = scmp.le.s32.totalorder 1, %s14
      %p189 = scmp.lt.s32.totalorder %s14, 3
      %p190 = pnand %p188, %p189
      %p191 = pneg %p190
      // Predicated region
      $region25: #{_fwd.1} parent=5 // pred_check
        _
      $region26: #{_fwd.1} parent=5 // pred_check_branch
        %193 = sbr.rel (%p190) target = $region28
      $region27: #{_fwd.1} parent=5 // pred_region
        %s194 = ssub.s32 %s14, 1
        %s195 = sand.u32 %s50, 1
        %s196 = scalar_lea.sflag [#allocation8], %s195
        %s197 = sand.u32 %s50, 1
        %s198 = smul.addr %s197, 64
        %s199 = scalar_lea.vmem [#allocation7], %s198
        // Predicated region
        $region29: #{_fwd.1} parent=27 // pred_check
          %p200 = pneg %p63
        $region30: #{_fwd.1} parent=27 // pred_check_branch
          %202 = sbr.rel (%p200) target = $region32
        $region31: #{_fwd.1} parent=27 // pred_region
          %203 = dma.done %s196, 1024
        $region32: #{_fwd.1} parent=27 // pred_fallthru
          _
        %s204 = sand.u32 %s80, 1
        %s205 = scalar_lea.sflag [#allocation10], %s204
        %s206 = sand.u32 %s80, 1
        %s207 = smul.addr %s206, 64
        %s208 = scalar_lea.vmem [#allocation9], %s207
        // Predicated region
        $region33: #{_fwd.1} parent=27 // pred_check
          %p209 = pneg %p93
        $region34: #{_fwd.1} parent=27 // pred_check_branch
          %211 = sbr.rel (%p209) target = $region36
        $region35: #{_fwd.1} parent=27 // pred_region
          %212 = dma.done %s205, 1024
        $region36: #{_fwd.1} parent=27 // pred_fallthru
          _
        %s213 = sand.u32 %s50, 1
        %s214 = scalar_lea.sflag [#allocation8], %s213
        %s215 = sand.u32 %s50, 1
        %s216 = smul.addr %s215, 64
        %s217 = scalar_lea.vmem [#allocation7], %s216
        %p218 = pneg %p63
        %p219 = pneg %p60
        %s220 = sand.u32 %s80, 1
        %s221 = scalar_lea.sflag [#allocation10], %s220
        %s222 = sand.u32 %s80, 1
        %s223 = smul.addr %s222, 64
        %s224 = scalar_lea.vmem [#allocation9], %s223
        %p225 = pneg %p93
        %p226 = pneg %p90
        %p227 = pneg %p119
        %p228 = pneg %p116
        %p229 = scmp.lt.s32.totalorder %s24, 1
        %s230 = scalar_select %p229, %s24, 1
        %s231 = smul.addr %s230, 8
        %s232 = scalar_lea.vmem %s2, %s231
        %s233 = sadd.s32 %s24, %s25
        %s234 = smul.u32 4, %s233
        %s235 = smul.u32 2, %s26
        %s236 = sadd.s32 %s24, %s25
        %s237 = smul.u32 4, %s236
        %s238 = smul.u32 2, %s26
        %p239 = scmp.lt.s32.totalorder %s24, 1
        %s240 = scalar_select %p239, %s24, 1
        %s241 = smul.addr %s240, 8
        %s242 = scalar_lea.vmem %s2, %s241
        %p243 = scmp.eq.s32.totalorder %s25, 0
        %p244 = scmp.eq.s32.totalorder %s26, 0
        %p245 = pnand %p243, %p244
        %p246 = pneg %p245
        // Predicated region
        $region37: #{_fwd.1} parent=27 // pred_check
          _
        $region38: #{_fwd.1} parent=27 // pred_check_branch
          %248 = sbr.rel (%p245) target = $region40
        $region39: #{_fwd.1} parent=27 // pred_region
          %vm249 = vcmask 130048
          %250 = vst.msk [vmem:[#allocation2] sm:$0xff] %vm249, 0.0
          %251 = vst.msk [vmem:[#allocation2 + $0x8] sm:$0xff] %vm249, 0.0
          %252 = vst.msk [vmem:[#allocation3] sm:$0xff] %vm249, 0.0
          %vm253 = vcmask 129024
          %254 = vst.msk [vmem:[#allocation3 + $0x8] sm:$0x7f] %vm253, 0.0
          %vm255 = vcmask 121856
          %256 = vst.msk [vmem:[#allocation4] sm:$0xff] %vm255, 0.0
          %257 = vst.msk [vmem:[#allocation4 + $0x8] sm:$0xff] %vm255, 0.0
          %vm258 = vcmask 122880
          %259 = vst.msk [vmem:[#allocation5] sm:$0x1] %vm258, 0.0
        $region40: #{_fwd.1} parent=27 // pred_fallthru
          _
        %v260 = vld [vmem:[%s199] sm:$0xff]
        %v261 = vld [vmem:[%s199 + $0x8] sm:$0xff]
        %v262 = vld [vmem:[%s199 + $0x10] sm:$0xff]
        %v263 = vld [vmem:[%s199 + $0x18] sm:$0xff]
        %v264 = vld [vmem:[%s199 + $0x20] sm:$0xff]
        %v265 = vld [vmem:[%s199 + $0x28] sm:$0xff]
        %v266 = vld [vmem:[%s199 + $0x30] sm:$0xff]
        %v267 = vld [vmem:[%s199 + $0x38] sm:$0xff]
        %v268 = vld [vmem:[%s208] sm:$0xff]
        %v269 = vld [vmem:[%s208 + $0x8] sm:$0xff]
        %v270 = vld [vmem:[%s208 + $0x10] sm:$0xff]
        %v271 = vld [vmem:[%s208 + $0x18] sm:$0xff]
        %v272 = vld [vmem:[%s208 + $0x20] sm:$0xff]
        %v273 = vld [vmem:[%s208 + $0x28] sm:$0xff]
        %v274 = vld [vmem:[%s208 + $0x30] sm:$0xff]
        %v275 = vld [vmem:[%s208 + $0x38] sm:$0xff]
        %v276 = vld [vmem:[#allocation2] sm:$0xff]
        %v277 = vld [vmem:[#allocation2 + $0x8] sm:$0xff]
        %v278 = vsub.f32 %v260, %v268
        %v279 = vsub.f32 %v261, %v269
        %v280 = vsub.f32 %v262, %v270
        %v281 = vsub.f32 %v263, %v271
        %v282 = vsub.f32 %v264, %v272
        %v283 = vsub.f32 %v265, %v273
        %v284 = vsub.f32 %v266, %v274
        %v285 = vsub.f32 %v267, %v275
        %v286 = vand.u32 2147483647, %v278
        %v287 = vand.u32 2147483647, %v279
        %v288 = vand.u32 2147483647, %v280
        %v289 = vand.u32 2147483647, %v281
        %v290 = vand.u32 2147483647, %v282
        %v291 = vand.u32 2147483647, %v283
        %v292 = vand.u32 2147483647, %v284
        %v293 = vand.u32 2147483647, %v285
        %vm294 = vcmask 130048
        %v295 = vsel %vm294, %v286, 0.0
        %v296 = vsel %vm294, %v288, 0.0
        %v297 = vadd.f32 %v295, %v296
        %v298 = vsel %vm294, %v290, 0.0
        %v299 = vadd.f32 %v297, %v298
        %v300 = vsel %vm294, %v292, 0.0
        %v301 = vadd.f32 %v299, %v300
        %v302 = vsel %vm294, %v287, 0.0
        %v303 = vsel %vm294, %v289, 0.0
        %v304 = vadd.f32 %v302, %v303
        %v305 = vsel %vm294, %v291, 0.0
        %v306 = vadd.f32 %v304, %v305
        %v307 = vsel %vm294, %v293, 0.0
        %v308 = vadd.f32 %v306, %v307
        %v309 = vadd.f32 %v276, %v301
        %v310 = vadd.f32 %v277, %v308
        %311 = vst.msk [vmem:[#allocation2] sm:$0xff] %vm294, %v309
        %312 = vst.msk [vmem:[#allocation2 + $0x8] sm:$0xff] %vm294, %v310
        %v313 = vld [vmem:[#allocation3] sm:$0xff]
        %v314 = vld [vmem:[#allocation3 + $0x8] sm:$0x7f]
        %vm323 = vcmask 1040384
        %v324 = vrot.slane %v260, 7
        %v325 = vrot.slane %v261, 7
        %v326 = vsel %vm323, %v324, %v325
        %v327 = vrot.slane %v262, 7
        %v328 = vrot.slane %v263, 7
        %v329 = vsel %vm323, %v327, %v328
        %v330 = vrot.slane %v264, 7
        %v331 = vrot.slane %v265, 7
        %v332 = vsel %vm323, %v330, %v331
        %v333 = vrot.slane %v266, 7
        %v334 = vrot.slane %v267, 7
        %v335 = vsel %vm323, %v333, %v334
        %v344 = vsub.f32 %v260, %v324
        %v345 = vsub.f32 %v261, %v326
        %v346 = vsub.f32 %v262, %v327
        %v347 = vsub.f32 %v263, %v329
        %v348 = vsub.f32 %v264, %v330
        %v349 = vsub.f32 %v265, %v332
        %v350 = vsub.f32 %v266, %v333
        %v351 = vsub.f32 %v267, %v335
        %v352 = vand.u32 2147483647, %v344
        %v353 = vand.u32 2147483647, %v345
        %v354 = vand.u32 2147483647, %v346
        %v355 = vand.u32 2147483647, %v347
        %v356 = vand.u32 2147483647, %v348
        %v357 = vand.u32 2147483647, %v349
        %v358 = vand.u32 2147483647, %v350
        %v359 = vand.u32 2147483647, %v351
        %vm360 = vcmask 130049
        %v361 = vsel %vm360, %v352, 0.0
        %v362 = vsel %vm360, %v354, 0.0
        %v363 = vadd.f32 %v361, %v362
        %v364 = vsel %vm360, %v356, 0.0
        %v365 = vadd.f32 %v363, %v364
        %v366 = vsel %vm360, %v358, 0.0
        %v367 = vadd.f32 %v365, %v366
        %v368 = vsel %vm294, %v353, 0.0
        %v369 = vsel %vm294, %v355, 0.0
        %v370 = vadd.f32 %v368, %v369
        %v371 = vsel %vm294, %v357, 0.0
        %v372 = vadd.f32 %v370, %v371
        %v373 = vsel %vm294, %v359, 0.0
        %v374 = vadd.f32 %v372, %v373
        %vm377 = vcmask 1046528
        %v378 = vrot.slane %v367, 1
        %v379 = vrot.slane %v374, 1
        %v380 = vsel %vm377, %v378, %v379
        %v383 = vadd.f32 %v313, %v380
        %v384 = vadd.f32 %v314, %v379
        %385 = vst.msk [vmem:[#allocation3] sm:$0xff] %vm294, %v383
        %vm386 = vcmask 129024
        %387 = vst.msk [vmem:[#allocation3 + $0x8] sm:$0x7f] %vm386, %v384
        %v388 = vld [vmem:[#allocation4] sm:$0xff]
        %v389 = vld [vmem:[#allocation4 + $0x8] sm:$0xff]
        %390 = vrot.lane.b32.xlu0 %v260, 1
        %v391 = vpop.permute.xlu0 %390
        %392 = vrot.lane.b32.xlu0 %v261, 1
        %v393 = vpop.permute.xlu0 %392
        %394 = vrot.lane.b32.xlu0 %v262, 1
        %v395 = vpop.permute.xlu0 %394
        %396 = vrot.lane.b32.xlu0 %v263, 1
        %v397 = vpop.permute.xlu0 %396
        %398 = vrot.lane.b32.xlu0 %v264, 1
        %v399 = vpop.permute.xlu0 %398
        %400 = vrot.lane.b32.xlu0 %v265, 1
        %v401 = vpop.permute.xlu0 %400
        %402 = vrot.lane.b32.xlu0 %v266, 1
        %v403 = vpop.permute.xlu0 %402
        %404 = vrot.lane.b32.xlu0 %v267, 1
        %v405 = vpop.permute.xlu0 %404
        %v414 = vsub.f32 %v260, %v391
        %v415 = vsub.f32 %v261, %v393
        %v416 = vsub.f32 %v262, %v395
        %v417 = vsub.f32 %v263, %v397
        %v418 = vsub.f32 %v264, %v399
        %v419 = vsub.f32 %v265, %v401
        %v420 = vsub.f32 %v266, %v403
        %v421 = vsub.f32 %v267, %v405
        %v422 = vand.u32 2147483647, %v414
        %v423 = vand.u32 2147483647, %v415
        %v424 = vand.u32 2147483647, %v416
        %v425 = vand.u32 2147483647, %v417
        %v426 = vand.u32 2147483647, %v418
        %v427 = vand.u32 2147483647, %v419
        %v428 = vand.u32 2147483647, %v420
        %v429 = vand.u32 2147483647, %v421
        %vm430 = vcmask 130056
        %v431 = vsel %vm430, %v422, 0.0
        %v432 = vsel %vm430, %v424, 0.0
        %v433 = vadd.f32 %v431, %v432
        %v434 = vsel %vm430, %v426, 0.0
        %v435 = vadd.f32 %v433, %v434
        %v436 = vsel %vm430, %v428, 0.0
        %v437 = vadd.f32 %v435, %v436
        %v438 = vsel %vm430, %v423, 0.0
        %v439 = vsel %vm430, %v425, 0.0
        %v440 = vadd.f32 %v438, %v439
        %v441 = vsel %vm430, %v427, 0.0
        %v442 = vadd.f32 %v440, %v441
        %v443 = vsel %vm430, %v429, 0.0
        %v444 = vadd.f32 %v442, %v443
        %447 = vrot.lane.b32.xlu0 %v437, 127
        %v448 = vpop.permute.xlu0 %447
        %449 = vrot.lane.b32.xlu0 %v444, 127
        %v450 = vpop.permute.xlu0 %449
        %v453 = vadd.f32 %v388, %v448
        %v454 = vadd.f32 %v389, %v450
        %vm455 = vcmask 121856
        %456 = vst.msk [vmem:[#allocation4] sm:$0xff] %vm455, %v453
        %457 = vst.msk [vmem:[#allocation4 + $0x8] sm:$0xff] %vm455, %v454
        // Predicated region
        $region41: #{_fwd.1} parent=27 // pred_check
          _
        $region42: #{_fwd.1} parent=27 // pred_check_branch
          %459 = sbr.rel (%p245) target = $region44
        $region43: #{_fwd.1} parent=27 // pred_region
          %v460 = vld [vmem:[#allocation2] sm:$0xff]
          %v461 = vld [vmem:[#allocation2 + $0x8] sm:$0xff]
          %v462 = vsel %vm294, %v460, 0.0
          %v463 = vsel %vm294, %v461, 0.0
          %v464 = vadd.f32 %v462, %v463
          %465 = vadd.xlane.f32.xlu0 %v464
          %v466 = vpop.xlane.xlu0 %465
          %v467 = vrot.slane %v466, 4
          %v468 = vadd.f32 %v466, %v467
          %v469 = vrot.slane %v468, 2
          %v470 = vadd.f32 %v468, %v469
          %v471 = vrot.slane %v470, 1
          %v472 = vadd.f32 %v470, %v471
          %s473 = vtos %v472
          %v474 = vstv %s473
          %v475 = vmul.f32 %v474, 0.00048828125
          %v476 = vld [vmem:[#allocation3] sm:$0xff]
          %v477 = vld [vmem:[#allocation3 + $0x8] sm:$0x7f]
          %v478 = vsel %vm294, %v476, 0.0
          %v479 = vsel %vm386, %v477, 0.0
          %v480 = vadd.f32 %v478, %v479
          %481 = vadd.xlane.f32.xlu0 %v480
          %v482 = vpop.xlane.xlu0 %481
          %v483 = vrot.slane %v482, 4
          %v484 = vadd.f32 %v482, %v483
          %v485 = vrot.slane %v484, 2
          %v486 = vadd.f32 %v484, %v485
          %v487 = vrot.slane %v486, 1
          %v488 = vadd.f32 %v486, %v487
          %s489 = vtos %v488
          %v490 = vstv %s489
          %v491 = vmul.f32 %v490, 5.2083335e-05
          %v492 = vadd.f32 %v491, 0.0
          %v493 = vld [vmem:[#allocation4] sm:$0xff]
          %v494 = vld [vmem:[#allocation4 + $0x8] sm:$0xff]
          %v495 = vsel %vm455, %v493, 0.0
          %v496 = vsel %vm455, %v494, 0.0
          %v497 = vadd.f32 %v495, %v496
          %498 = vadd.xlane.f32.xlu0 %v497
          %v499 = vpop.xlane.xlu0 %498
          %v500 = vrot.slane %v499, 4
          %v501 = vadd.f32 %v499, %v500
          %v502 = vrot.slane %v501, 2
          %v503 = vadd.f32 %v501, %v502
          %v504 = vrot.slane %v503, 1
          %v505 = vadd.f32 %v503, %v504
          %s506 = vtos %v505
          %v507 = vstv %s506
          %v508 = vmul.f32 %v507, 5.2083335e-05
          %v509 = vadd.f32 %v492, %v508
          %v510 = vadd.f32 %v475, %v509
          %v511 = vlaneseq
          %v512 = vand.u32 %v511, 127
          %vm513 = vcmp.eq.s32.totalorder %v512, 0
          %vm514 = vcmp.eq.s32.totalorder %v512, 1
          %v515 = vsel %vm514, %v475, %v509
          %v516 = vsel %vm513, %v510, %v515
          %517 = vst [vmem:[%s242] sm:$0xff] %v516
        $region44: #{_fwd.1} parent=27 // pred_fallthru
          _
        %p518 = scmp.lt.s32.totalorder %s24, 1
        %s519 = scalar_select %p518, %s24, 1
        %s520 = smul.addr %s519, 8
        %s521 = scalar_lea.vmem %s2, %s520
        // Predicated region
        $region45: #{_fwd.1} parent=27 // pred_check
          %p522 = pneg %p116
        $region46: #{_fwd.1} parent=27 // pred_check_branch
          %524 = sbr.rel (%p522) target = $region48
        $region47: #{_fwd.1} parent=27 // pred_region
          _
        $region48: #{_fwd.1} parent=27 // pred_fallthru
          _
      $region28: #{_fwd.1} parent=5 // pred_fallthru
        _
      %p525 = scmp.le.s32.totalorder 2, %s14
      // Predicated region
      $region49: #{_fwd.1} parent=5 // pred_check
        %p526 = pneg %p525
      $region50: #{_fwd.1} parent=5 // pred_check_branch
        %528 = sbr.rel (%p526) target = $region52
      $region51: #{_fwd.1} parent=5 // pred_region
        %s529 = ssub.s32 %s14, 2
        // Predicated region
        $region53: #{_fwd.1} parent=51 // pred_check
          %p530 = pneg %p122
        $region54: #{_fwd.1} parent=51 // pred_check_branch
          %532 = sbr.rel (%p530) target = $region56
        $region55: #{_fwd.1} parent=51 // pred_region
          %p533 = scmp.lt.s32.totalorder %s27, 1
          %s534 = scalar_select %p533, %s27, 1
          %s535 = smul.addr %s534, 8
          %s536 = scalar_lea.vmem %s2, %s535
        $region56: #{_fwd.1} parent=51 // pred_fallthru
          _
      $region52: #{_fwd.1} parent=5 // pred_fallthru
        _
    $region6: #{_fwd.1} parent=1 // loop_footer
      %s18 = sadd.s32 1, %s14
    $region7: #{_fwd.1} parent=1 // loop_footer_branch
      %13 = sbr.rel target = $region3
    $region8: #{_fwd.1} parent=1 // loop_exit
      _
    %537 = vsyncpa [#allocation8], 1
    %s538 = scalar_lea.sflag [#allocation8], 1
    %539 = vsyncpa %s538, 1
    %540 = vsyncpa [#allocation10], 1
    %s541 = scalar_lea.sflag [#allocation10], 1
    %542 = vsyncpa %s541, 1

</llo_original>
